<compile_context>
chip_gen: v7x
topology: tpu7x:2x2x1
jax: 0.10.0
libtpu: 0.0.40
codegen_flags: <defaults>
</compile_context>

<pallas_src>
import math

import jax
import jax.numpy as jnp
from jax.experimental import pallas as pl
from jax.experimental.pallas import tpu as pltpu

DIM = 2
DIMC = 2
DIMH = 16
NUM_HIDDEN_LAYERS = 2

# Kernel below is hand-specialized to the default configuration.
assert (DIM, DIMC, DIMH, NUM_HIDDEN_LAYERS) == (2, 2, 16, 2)

# --- packed parameter layout -------------------------------------------------
# W slab (88, 16)  [everything that feeds the MXU]:
#   rows  0:16  Wcz1                      (hidden-layer z gate)
#   rows 16:32  s1 * Wcc1                 (cf -> h1)
#   rows 32:48  WczL[:16]                 (output z gate, z0 half)
#   rows 48:64  WczL[16:]                 (output z gate, z1 half)
#   rows 64:66  Wcx1                      (hidden-layer x gate)
#   rows 66:68  (sL*WxL) * WcxL           (output x gate, pre-scaled)
#   rows 68:72  zeros
#   rows 72:88  s1 * softplus(Wz1) / 16   (PosLinear, folded)
# V slab (232, 1)  [VPU vectors]: ten 16-long feature vectors followed by the
#   72-long bias column that aligns 1:1 with W-slab rows 0:72 (row 68 carries
#   the folded output bias, so it is broadcast over lanes for free).
NBIG = 72
WROWS = NBIG + DIMH          # 88
VROWS = 10 * DIMH + NBIG     # 232


def _softplus(x):
    # numerically stable softplus, matches torch.nn.functional.softplus
    return jnp.maximum(x, 0.0) + jnp.log1p(jnp.exp(-jnp.abs(x)))


def _elu(x):
    # torch.nn.ELU(alpha=1.0)
    return jnp.where(x > 0.0, x, jnp.exp(jnp.minimum(x, 0.0)) - 1.0)


def _round_up(n, m):
    return ((n + m - 1) // m) * m


# ---------------------------------------------------------------------------
# Kernel (feature-major: every activation is (features, tb), tb on lanes)
# ---------------------------------------------------------------------------
def picnn_kernel(xc_ref, w_ref, v_ref, out_ref):
    x0 = xc_ref[0:1, :]                      # (1, tb)
    x1 = xc_ref[1:2, :]
    c0 = xc_ref[2:3, :]
    c1 = xc_ref[3:4, :]

    w = w_ref[...]                           # (88, 16)
    v = v_ref[...]                           # (232, 1)

    w0c0, w0c1, b0 = v[0:16], v[16:32], v[32:48]
    wcc0, wcc1, bc = v[48:64], v[64:80], v[80:96]
    wx1c0, wx1c1 = v[96:112], v[112:128]
    wzla, wzlb = v[128:144], v[144:160]
    bbig = v[160:232]                        # (72, 1)

    # z0 = softplus(actnorm0(Wzs[0](x)))   (scale/bias pre-folded)
    z0 = _softplus(w0c0 * x0 + w0c1 * x1 + b0)            # (16, tb)
    # cf = ELU(actnormc(Wcs[0](c)))        (pre-folded)
    cf = _elu(wcc0 * c0 + wcc1 * c1 + bc)                  # (16, tb)

    # One fused MXU pass over cf for every conditioning weight + Wcc1.
    big = jnp.dot(w[0:NBIG], cf,
                  preferred_element_type=jnp.float32) + bbig   # (72, tb)

    cz1 = _softplus(big[0:16])               # hidden-layer z gate
    hcc = big[16:32]                         # Wcc1@cf + all folded h1 biases
    czla = _softplus(big[32:48])             # output z gate (z0 half)
    czlb = _softplus(big[48:64])             # output z gate (z1 half)
    cx1_0 = big[64:65]                       # hidden-layer x gates
    cx1_1 = big[65:66]
    cxl_0 = big[66:67]                       # output x gates (sL*WxL pre-scaled)
    cxl_1 = big[67:68]
    bl = big[68:69]                          # folded output bias (W row is 0)

    # z1 = softplus(actnorm1(PosLin(z0*cz1) + Wx(x*cx1) + Wcc(cf)))
    h1 = jnp.dot(w[NBIG:WROWS], z0 * cz1,
                 preferred_element_type=jnp.float32)
    h1 = h1 + hcc
    h1 = h1 + wx1c0 * (x0 * cx1_0) + wx1c1 * (x1 * cx1_1)
    z1 = _softplus(h1)                                     # (16, tb)

    # out = actnormL(PosLin32->1([z0,z1]*czL) + WxL(x*cxL))  (all folded)
    acc = wzla * (z0 * czla) + wzlb * (z1 * czlb)          # (16, tb)
    out = jnp.sum(acc, axis=0, keepdims=True)              # (1, tb)
    out = out + x0 * cxl_0 + x1 * cxl_1 + bl
    out_ref[...] = out.astype(out_ref.dtype)


# ---------------------------------------------------------------------------
# Wrapper
# ---------------------------------------------------------------------------
_DEVICE_INFO = {}


def _tensorcores_per_chip():
    if "tc" not in _DEVICE_INFO:
        try:
            kind = jax.devices()[0].device_kind.lower()
            _DEVICE_INFO["tc"] = 2 if "v7" in kind else 1
        except Exception:  # pragma: no cover - defensive
            _DEVICE_INFO["tc"] = 1
    return _DEVICE_INFO["tc"]


def densepicnn_forward(x, c, wslab, vslab, *, tb=4096):
    """x: (N, DIM), c: (N, DIMC) float32. Returns (N, 1) float32."""
    assert x.ndim == 2 and c.ndim == 2 and x.shape[0] == c.shape[0]
    assert x.shape[1] == DIM and c.shape[1] == DIMC
    assert wslab.shape == (WROWS, DIMH) and vslab.shape == (VROWS, 1)
    assert tb % 128 == 0

    n = x.shape[0]
    n128 = _round_up(n, 128)
    tb_eff = min(tb, n128)
    # v7x has 2 TensorCores per chip: keep >=2 "parallel" grid steps whenever
    # possible so both cores get work; v5e/v6e keep the largest tile.
    if _tensorcores_per_chip() >= 2 and n128 >= 2 * 128:
        tb_eff = min(tb_eff, max(128, (n128 // 256) * 128))
    n_pad = _round_up(n, tb_eff)

    # One feature-major input slab: rows 0:2 = x.T, rows 2:4 = c.T.
    xc = jnp.concatenate([x.astype(jnp.float32), c.astype(jnp.float32)], axis=1)
    xc = jnp.pad(xc, ((0, n_pad - n), (0, 0))).T           # (4, n_pad)

    cost = pl.CostEstimate(
        flops=3400 * n_pad,
        transcendentals=180 * n_pad,
        bytes_accessed=(DIM + DIMC + 1) * 4 * n_pad + 4 * (WROWS * DIMH + VROWS),
    )

    out = pl.pallas_call(
        picnn_kernel,
        out_shape=jax.ShapeDtypeStruct((1, n_pad), jnp.float32),
        grid_spec=pltpu.PrefetchScalarGridSpec(
            num_scalar_prefetch=0,
            grid=(n_pad // tb_eff,),
            in_specs=[
                pl.BlockSpec((DIM + DIMC, tb_eff), lambda i: (0, i)),
                pl.BlockSpec((WROWS, DIMH), lambda i: (0, 0)),   # grid-invariant
                pl.BlockSpec((VROWS, 1), lambda i: (0, 0)),      # grid-invariant
            ],
            out_specs=pl.BlockSpec((1, tb_eff), lambda i: (0, i)),
        ),
        compiler_params=pltpu.CompilerParams(
            dimension_semantics=("parallel",)),
        cost_estimate=cost,
    )(xc, wslab, vslab)

    return out[0, :n].reshape(n, 1)


# ---------------------------------------------------------------------------
# Parameters: raw (PyTorch convention) + one-time folding into the two slabs
# ---------------------------------------------------------------------------
def init_raw_params(key):
    """Deterministic synthetic parameters with DensePICNN shapes."""
    ks = jax.random.split(key, 28)

    def rn(k, shape, s=0.5):
        return s * jax.random.normal(k, shape, jnp.float32)

    return dict(
        W0=rn(ks[0], (DIMH, DIM)),      b0=rn(ks[1], (DIMH,)),      # Wzs[0]
        Wz1=rn(ks[2], (DIMH, DIMH)),    bz1=rn(ks[3], (DIMH,)),     # Wzs[1] (PosLinear)
        WzL=rn(ks[4], (1, 2 * DIMH)),                                # Wzs[2] (PosLinear, no bias)
        Wx1=rn(ks[5], (DIMH, DIM)),     bx1=rn(ks[6], (DIMH,)),     # Wxs[0]
        WxL=rn(ks[7], (1, DIM)),                                     # Wxs[1] (no bias)
        Wc=rn(ks[8], (DIMH, DIMC)),     bc=rn(ks[9], (DIMH,)),      # Wcs[0]
        Wcz1=rn(ks[10], (DIMH, DIMH)),  bcz1=rn(ks[11], (DIMH,)),   # Wczs[0]
        WczL=rn(ks[12], (2 * DIMH, DIMH)), bczL=rn(ks[13], (2 * DIMH,)),  # Wczs[1]
        Wcx1=rn(ks[14], (DIM, DIMH)),   bcx1=rn(ks[15], (DIM,)),    # Wcxs[0]
        WcxL=rn(ks[16], (DIM, DIMH)),   bcxL=rn(ks[17], (DIM,)),    # Wcxs[1]
        Wcc1=rn(ks[18], (DIMH, DIMH)),  bcc1=rn(ks[19], (DIMH,)),   # Wccs[0]
        an0_b=rn(ks[20], (DIMH,)),      an0_s=rn(ks[21], (DIMH,), 0.1),   # actnorm0
        an1_b=rn(ks[22], (DIMH,)),      an1_s=rn(ks[23], (DIMH,), 0.1),   # actnorms[0]
        anL_b=rn(ks[24], (1,)),         anL_s=rn(ks[25], (1,), 0.1),      # actnorms[1]
        anc_b=rn(ks[26], (DIMH,)),      anc_s=rn(ks[27], (DIMH,), 0.1),   # actnormc
    )


def prepare_kernel_params(raw):
    """Fold all grid-invariant transforms once and pack into the two slabs.

    The gate constants (+e^-1, +log(e-1), +1.0) follow the PyTorch module; if
    the real module changes they must stay in sync here.
    """
    sp = _softplus
    s0 = jnp.exp(raw['an0_s'])
    sc = jnp.exp(raw['anc_s'])
    s1 = jnp.exp(raw['an1_s'])
    sL = jnp.exp(raw['anL_s'])[0]

    # ---- W slab (88, 16) ----
    wxl = sL * raw['WxL'][0]                                      # (2,)
    wbig = jnp.concatenate([
        raw['Wcz1'],                                              # cz1 gate
        s1[:, None] * raw['Wcc1'],                                # cf -> h1
        raw['WczL'][:DIMH, :],                                    # czL (z0 half)
        raw['WczL'][DIMH:, :],                                    # czL (z1 half)
        raw['Wcx1'],                                              # cx1 gate (2,16)
        wxl[:, None] * raw['WcxL'],                               # out x gate, pre-scaled
        jnp.zeros((4, DIMH), jnp.float32),
    ], axis=0)                                                    # (72, 16)
    wz1 = s1[:, None] * sp(raw['Wz1']) * (1.0 / DIMH)             # PosLinear folded
    wslab = jnp.concatenate([wbig, wz1], axis=0)                  # (88, 16)

    # ---- bias column aligned with wbig rows 0:72 ----
    bbig = jnp.concatenate([
        raw['bcz1'] + math.exp(-1.0),
        (raw['bz1'] * (1.0 / DIMH) + raw['bx1'] + raw['bcc1']
         + raw['an1_b']) * s1,
        raw['bczL'][:DIMH] + math.log(math.e - 1.0),
        raw['bczL'][DIMH:] + math.log(math.e - 1.0),
        raw['bcx1'] + 1.0,
        wxl * (raw['bcxL'] + 1.0),
        raw['anL_b'] * sL,                                        # row 68: output bias
        jnp.zeros((3,), jnp.float32),
    ], axis=0)                                                    # (72,)

    # ---- V slab (232, 1) ----
    w0 = s0[:, None] * raw['W0']
    wc = sc[:, None] * raw['Wc']
    wx1 = s1[:, None] * raw['Wx1']
    wzl = sp(raw['WzL'])[0] * (sL / (2.0 * DIMH))                 # PosLinear folded
    vslab = jnp.concatenate([
        w0[:, 0], w0[:, 1], (raw['b0'] + raw['an0_b']) * s0,
        wc[:, 0], wc[:, 1], (raw['bc'] + raw['anc_b']) * sc,
        wx1[:, 0], wx1[:, 1],
        wzl[:DIMH], wzl[DIMH:],
        bbig,
    ], axis=0).reshape(VROWS, 1)

    return wslab.astype(jnp.float32), vslab.astype(jnp.float32)


# ---------------------------------------------------------------------------
# Pure-JAX reference mirroring the PyTorch forward (for verification)
# ---------------------------------------------------------------------------
def reference_forward(x, c, raw):
    sp = _softplus
    z0 = sp((x @ raw['W0'].T + raw['b0'] + raw['an0_b']) * jnp.exp(raw['an0_s']))
    cf = _elu((c @ raw['Wc'].T + raw['bc'] + raw['anc_b']) * jnp.exp(raw['anc_s']))

    cz1 = sp(cf @ raw['Wcz1'].T + raw['bcz1'] + math.exp(-1.0))
    cx1 = cf @ raw['Wcx1'].T + raw['bcx1'] + 1.0
    h1 = ((z0 * cz1) @ sp(raw['Wz1']).T + raw['bz1']) * (1.0 / DIMH)      # PosLinear
    h1 = h1 + (x * cx1) @ raw['Wx1'].T + raw['bx1']
    h1 = h1 + cf @ raw['Wcc1'].T + raw['bcc1']
    z1 = sp((h1 + raw['an1_b']) * jnp.exp(raw['an1_s']))

    zc = jnp.concatenate([z0, z1], axis=1)
    czL = sp(cf @ raw['WczL'].T + raw['bczL'] + math.log(math.e - 1.0))
    cxL = cf @ raw['WcxL'].T + raw['bcxL'] + 1.0
    out = ((zc * czL) @ sp(raw['WzL']).T) * (1.0 / (2 * DIMH))            # PosLinear (no bias)
    out = out + (x * cxL) @ raw['WxL'].T
    return (out + raw['anL_b']) * jnp.exp(raw['anL_s'])


if __name__ == "__main__":
    key = jax.random.PRNGKey(0)
    kx, kc, kp = jax.random.split(key, 3)

    n = 300  # small, not a multiple of the tile -> exercises padding + grid
    x = jax.random.normal(kx, (n, DIM), jnp.float32)
    c = jax.random.normal(kc, (n, DIMC), jnp.float32)

    raw = init_raw_params(kp)
    wslab, vslab = prepare_kernel_params(raw)

    out = densepicnn_forward(x, c, wslab, vslab, tb=256)  # multi-step grid
    out = jax.block_until_ready(out)

    ref = reference_forward(x, c, raw)
    assert out.shape == (n, 1)
    err = float(jnp.max(jnp.abs(out - ref)))
    # tolerance leaves headroom for MXU f32 pass decomposition; any wiring /
    # folding bug produces errors orders of magnitude larger.
    assert jnp.allclose(out, ref, atol=2e-3, rtol=2e-3), err

    print("KERNEL_OK")
</pallas_src>

<mosaic_0001>
module attributes {stable_mosaic.version = 11 : i64} {
  func.func @picnn_kernel(%arg0: i32, %arg1: memref<4x256xf32, #tpu.memory_space<vmem>>, %arg2: memref<88x16xf32, #tpu.memory_space<vmem>>, %arg3: memref<232x1xf32, #tpu.memory_space<vmem>>, %arg4: memref<1x256xf32, #tpu.memory_space<vmem>>) attributes {dimension_semantics = [#tpu.dimension_semantics<parallel>], iteration_bounds = array<i64: 2>, scalar_prefetch = 0 : i64, scratch_operands = 0 : i64, tpu.core_type = #tpu.core_type<tc>, window_params = [{transform_indices = @transform_0, window_bounds = array<i64: 4, 256>}, {pipeline_mode = #tpu.pipeline_mode<synchronous>, transform_indices = @transform_1, window_bounds = array<i64: 88, 16>}, {pipeline_mode = #tpu.pipeline_mode<synchronous>, transform_indices = @transform_2, window_bounds = array<i64: 232, 1>}, {transform_indices = @transform_3, window_bounds = array<i64: 1, 256>}]} {
    %c0 = arith.constant 0 : index
    %c0_0 = arith.constant 0 : index
    %0 = vector.load %arg1[%c0, %c0_0] : memref<4x256xf32, #tpu.memory_space<vmem>>, vector<1x256xf32>
    %c1 = arith.constant 1 : index
    %c0_1 = arith.constant 0 : index
    %1 = vector.load %arg1[%c1, %c0_1] : memref<4x256xf32, #tpu.memory_space<vmem>>, vector<1x256xf32>
    %c2 = arith.constant 2 : index
    %c0_2 = arith.constant 0 : index
    %2 = vector.load %arg1[%c2, %c0_2] : memref<4x256xf32, #tpu.memory_space<vmem>>, vector<1x256xf32>
    %c3 = arith.constant 3 : index
    %c0_3 = arith.constant 0 : index
    %3 = vector.load %arg1[%c3, %c0_3] : memref<4x256xf32, #tpu.memory_space<vmem>>, vector<1x256xf32>
    %c0_4 = arith.constant 0 : index
    %c0_5 = arith.constant 0 : index
    %4 = vector.load %arg2[%c0_4, %c0_5] : memref<88x16xf32, #tpu.memory_space<vmem>>, vector<88x16xf32>
    %c0_6 = arith.constant 0 : index
    %c0_7 = arith.constant 0 : index
    %5 = vector.load %arg3[%c0_6, %c0_7] : memref<232x1xf32, #tpu.memory_space<vmem>>, vector<232x1xf32>
    %6 = vector.extract_strided_slice %5 {offsets = [0, 0], sizes = [16, 1], strides = [1, 1]} : vector<232x1xf32> to vector<16x1xf32>
    %7 = vector.extract_strided_slice %5 {offsets = [16, 0], sizes = [16, 1], strides = [1, 1]} : vector<232x1xf32> to vector<16x1xf32>
    %8 = vector.extract_strided_slice %5 {offsets = [32, 0], sizes = [16, 1], strides = [1, 1]} : vector<232x1xf32> to vector<16x1xf32>
    %9 = vector.extract_strided_slice %5 {offsets = [48, 0], sizes = [16, 1], strides = [1, 1]} : vector<232x1xf32> to vector<16x1xf32>
    %10 = vector.extract_strided_slice %5 {offsets = [64, 0], sizes = [16, 1], strides = [1, 1]} : vector<232x1xf32> to vector<16x1xf32>
    %11 = vector.extract_strided_slice %5 {offsets = [80, 0], sizes = [16, 1], strides = [1, 1]} : vector<232x1xf32> to vector<16x1xf32>
    %12 = vector.extract_strided_slice %5 {offsets = [96, 0], sizes = [16, 1], strides = [1, 1]} : vector<232x1xf32> to vector<16x1xf32>
    %13 = vector.extract_strided_slice %5 {offsets = [112, 0], sizes = [16, 1], strides = [1, 1]} : vector<232x1xf32> to vector<16x1xf32>
    %14 = vector.extract_strided_slice %5 {offsets = [128, 0], sizes = [16, 1], strides = [1, 1]} : vector<232x1xf32> to vector<16x1xf32>
    %15 = vector.extract_strided_slice %5 {offsets = [144, 0], sizes = [16, 1], strides = [1, 1]} : vector<232x1xf32> to vector<16x1xf32>
    %16 = vector.extract_strided_slice %5 {offsets = [160, 0], sizes = [72, 1], strides = [1, 1]} : vector<232x1xf32> to vector<72x1xf32>
    %17 = vector.broadcast %6 : vector<16x1xf32> to vector<16x256xf32>
    %18 = vector.broadcast %0 : vector<1x256xf32> to vector<16x256xf32>
    %19 = arith.mulf %17, %18 : vector<16x256xf32>
    %20 = vector.broadcast %7 : vector<16x1xf32> to vector<16x256xf32>
    %21 = vector.broadcast %1 : vector<1x256xf32> to vector<16x256xf32>
    %22 = arith.mulf %20, %21 : vector<16x256xf32>
    %23 = arith.addf %19, %22 : vector<16x256xf32>
    %24 = vector.broadcast %8 : vector<16x1xf32> to vector<16x256xf32>
    %25 = arith.addf %23, %24 : vector<16x256xf32>
    %cst = arith.constant 0.000000e+00 : f32
    %26 = vector.broadcast %cst : f32 to vector<16x256xf32>
    %27 = arith.maximumf %25, %26 : vector<16x256xf32>
    %28 = math.absf %25 : vector<16x256xf32>
    %cst_8 = arith.constant 0.000000e+00 : f32
    %29 = vector.broadcast %cst_8 : f32 to vector<16x256xf32>
    %30 = arith.subf %29, %28 : vector<16x256xf32>
    %31 = math.exp %30 : vector<16x256xf32>
    %32 = math.log1p %31 : vector<16x256xf32>
    %33 = arith.addf %27, %32 : vector<16x256xf32>
    %34 = vector.broadcast %9 : vector<16x1xf32> to vector<16x256xf32>
    %35 = vector.broadcast %2 : vector<1x256xf32> to vector<16x256xf32>
    %36 = arith.mulf %34, %35 : vector<16x256xf32>
    %37 = vector.broadcast %10 : vector<16x1xf32> to vector<16x256xf32>
    %38 = vector.broadcast %3 : vector<1x256xf32> to vector<16x256xf32>
    %39 = arith.mulf %37, %38 : vector<16x256xf32>
    %40 = arith.addf %36, %39 : vector<16x256xf32>
    %41 = vector.broadcast %11 : vector<16x1xf32> to vector<16x256xf32>
    %42 = arith.addf %40, %41 : vector<16x256xf32>
    %cst_9 = arith.constant 0.000000e+00 : f32
    %43 = vector.broadcast %cst_9 : f32 to vector<16x256xf32>
    %44 = arith.cmpf ogt, %42, %43 : vector<16x256xf32>
    %cst_10 = arith.constant 0.000000e+00 : f32
    %45 = vector.broadcast %cst_10 : f32 to vector<16x256xf32>
    %46 = arith.minimumf %42, %45 : vector<16x256xf32>
    %47 = math.exp %46 : vector<16x256xf32>
    %cst_11 = arith.constant 1.000000e+00 : f32
    %48 = vector.broadcast %cst_11 : f32 to vector<16x256xf32>
    %49 = arith.subf %47, %48 : vector<16x256xf32>
    %50 = arith.select %44, %42, %49 : vector<16x256xi1>, vector<16x256xf32>
    %51 = vector.extract_strided_slice %4 {offsets = [0, 0], sizes = [72, 16], strides = [1, 1]} : vector<88x16xf32> to vector<72x16xf32>
    %cst_12 = arith.constant dense<0.000000e+00> : vector<72x256xf32>
    %52 = tpu.matmul %51, %50, %cst_12 {dimension_numbers = #tpu.dot_dimension_numbers<[1], [0], [0], [1], [0, 0, 1, 1], [], []>} : vector<72x16xf32>, vector<16x256xf32>, vector<72x256xf32> -> vector<72x256xf32>
    %53 = vector.broadcast %16 : vector<72x1xf32> to vector<72x256xf32>
    %54 = arith.addf %52, %53 : vector<72x256xf32>
    %55 = vector.extract_strided_slice %54 {offsets = [0, 0], sizes = [16, 256], strides = [1, 1]} : vector<72x256xf32> to vector<16x256xf32>
    %cst_13 = arith.constant 0.000000e+00 : f32
    %56 = vector.broadcast %cst_13 : f32 to vector<16x256xf32>
    %57 = arith.maximumf %55, %56 : vector<16x256xf32>
    %58 = math.absf %55 : vector<16x256xf32>
    %cst_14 = arith.constant 0.000000e+00 : f32
    %59 = vector.broadcast %cst_14 : f32 to vector<16x256xf32>
    %60 = arith.subf %59, %58 : vector<16x256xf32>
    %61 = math.exp %60 : vector<16x256xf32>
    %62 = math.log1p %61 : vector<16x256xf32>
    %63 = arith.addf %57, %62 : vector<16x256xf32>
    %64 = vector.extract_strided_slice %54 {offsets = [16, 0], sizes = [16, 256], strides = [1, 1]} : vector<72x256xf32> to vector<16x256xf32>
    %65 = vector.extract_strided_slice %54 {offsets = [32, 0], sizes = [16, 256], strides = [1, 1]} : vector<72x256xf32> to vector<16x256xf32>
    %cst_15 = arith.constant 0.000000e+00 : f32
    %66 = vector.broadcast %cst_15 : f32 to vector<16x256xf32>
    %67 = arith.maximumf %65, %66 : vector<16x256xf32>
    %68 = math.absf %65 : vector<16x256xf32>
    %cst_16 = arith.constant 0.000000e+00 : f32
    %69 = vector.broadcast %cst_16 : f32 to vector<16x256xf32>
    %70 = arith.subf %69, %68 : vector<16x256xf32>
    %71 = math.exp %70 : vector<16x256xf32>
    %72 = math.log1p %71 : vector<16x256xf32>
    %73 = arith.addf %67, %72 : vector<16x256xf32>
    %74 = vector.extract_strided_slice %54 {offsets = [48, 0], sizes = [16, 256], strides = [1, 1]} : vector<72x256xf32> to vector<16x256xf32>
    %cst_17 = arith.constant 0.000000e+00 : f32
    %75 = vector.broadcast %cst_17 : f32 to vector<16x256xf32>
    %76 = arith.maximumf %74, %75 : vector<16x256xf32>
    %77 = math.absf %74 : vector<16x256xf32>
    %cst_18 = arith.constant 0.000000e+00 : f32
    %78 = vector.broadcast %cst_18 : f32 to vector<16x256xf32>
    %79 = arith.subf %78, %77 : vector<16x256xf32>
    %80 = math.exp %79 : vector<16x256xf32>
    %81 = math.log1p %80 : vector<16x256xf32>
    %82 = arith.addf %76, %81 : vector<16x256xf32>
    %83 = vector.extract_strided_slice %54 {offsets = [64, 0], sizes = [1, 256], strides = [1, 1]} : vector<72x256xf32> to vector<1x256xf32>
    %84 = vector.extract_strided_slice %54 {offsets = [65, 0], sizes = [1, 256], strides = [1, 1]} : vector<72x256xf32> to vector<1x256xf32>
    %85 = vector.extract_strided_slice %54 {offsets = [66, 0], sizes = [1, 256], strides = [1, 1]} : vector<72x256xf32> to vector<1x256xf32>
    %86 = vector.extract_strided_slice %54 {offsets = [67, 0], sizes = [1, 256], strides = [1, 1]} : vector<72x256xf32> to vector<1x256xf32>
    %87 = vector.extract_strided_slice %54 {offsets = [68, 0], sizes = [1, 256], strides = [1, 1]} : vector<72x256xf32> to vector<1x256xf32>
    %88 = vector.extract_strided_slice %4 {offsets = [72, 0], sizes = [16, 16], strides = [1, 1]} : vector<88x16xf32> to vector<16x16xf32>
    %89 = arith.mulf %33, %63 : vector<16x256xf32>
    %cst_19 = arith.constant dense<0.000000e+00> : vector<16x256xf32>
    %90 = tpu.matmul %88, %89, %cst_19 {dimension_numbers = #tpu.dot_dimension_numbers<[1], [0], [0], [1], [0, 0, 1, 1], [], []>} : vector<16x16xf32>, vector<16x256xf32>, vector<16x256xf32> -> vector<16x256xf32>
    %91 = arith.addf %90, %64 : vector<16x256xf32>
    %92 = arith.mulf %0, %83 : vector<1x256xf32>
    %93 = vector.broadcast %12 : vector<16x1xf32> to vector<16x256xf32>
    %94 = vector.broadcast %92 : vector<1x256xf32> to vector<16x256xf32>
    %95 = arith.mulf %93, %94 : vector<16x256xf32>
    %96 = arith.addf %91, %95 : vector<16x256xf32>
    %97 = arith.mulf %1, %84 : vector<1x256xf32>
    %98 = vector.broadcast %13 : vector<16x1xf32> to vector<16x256xf32>
    %99 = vector.broadcast %97 : vector<1x256xf32> to vector<16x256xf32>
    %100 = arith.mulf %98, %99 : vector<16x256xf32>
    %101 = arith.addf %96, %100 : vector<16x256xf32>
    %cst_20 = arith.constant 0.000000e+00 : f32
    %102 = vector.broadcast %cst_20 : f32 to vector<16x256xf32>
    %103 = arith.maximumf %101, %102 : vector<16x256xf32>
    %104 = math.absf %101 : vector<16x256xf32>
    %cst_21 = arith.constant 0.000000e+00 : f32
    %105 = vector.broadcast %cst_21 : f32 to vector<16x256xf32>
    %106 = arith.subf %105, %104 : vector<16x256xf32>
    %107 = math.exp %106 : vector<16x256xf32>
    %108 = math.log1p %107 : vector<16x256xf32>
    %109 = arith.addf %103, %108 : vector<16x256xf32>
    %110 = arith.mulf %33, %73 : vector<16x256xf32>
    %111 = vector.broadcast %14 : vector<16x1xf32> to vector<16x256xf32>
    %112 = arith.mulf %111, %110 : vector<16x256xf32>
    %113 = arith.mulf %109, %82 : vector<16x256xf32>
    %114 = vector.broadcast %15 : vector<16x1xf32> to vector<16x256xf32>
    %115 = arith.mulf %114, %113 : vector<16x256xf32>
    %116 = arith.addf %112, %115 : vector<16x256xf32>
    %cst_22 = arith.constant dense<0.000000e+00> : vector<256xf32>
    %117 = vector.multi_reduction <add>, %116, %cst_22 [0] : vector<16x256xf32> to vector<256xf32>
    %118 = vector.shape_cast %117 : vector<256xf32> to vector<1x256xf32>
    %119 = arith.mulf %0, %85 : vector<1x256xf32>
    %120 = arith.addf %118, %119 : vector<1x256xf32>
    %121 = arith.mulf %1, %86 : vector<1x256xf32>
    %122 = arith.addf %120, %121 : vector<1x256xf32>
    %123 = arith.addf %122, %87 : vector<1x256xf32>
    %c0_23 = arith.constant 0 : index
    %c0_24 = arith.constant 0 : index
    %124 = vector.load %arg4[%c0_23, %c0_24] : memref<1x256xf32, #tpu.memory_space<vmem>>, vector<1x256xf32>
    tpu.vector_store %arg4[%c0_23, %c0_24], %123 {strides = array<i32>} : memref<1x256xf32, #tpu.memory_space<vmem>>, vector<1x256xf32>,
    return
  }
  func.func @transform_0(%arg0: i32) -> (i32, i32) {
    %c0_i32 = arith.constant 0 : i32
    %c0_i32_0 = arith.constant 0 : i32
    return %c0_i32, %arg0 : i32, i32
  }
  func.func @transform_1(%arg0: i32) -> (i32, i32) {
    %c0_i32 = arith.constant 0 : i32
    %c0_i32_0 = arith.constant 0 : i32
    %c0_i32_1 = arith.constant 0 : i32
    return %c0_i32, %c0_i32_0 : i32, i32
  }
  func.func @transform_2(%arg0: i32) -> (i32, i32) {
    %c0_i32 = arith.constant 0 : i32
    %c0_i32_0 = arith.constant 0 : i32
    %c0_i32_1 = arith.constant 0 : i32
    return %c0_i32, %c0_i32_0 : i32, i32
  }
  func.func @transform_3(%arg0: i32) -> (i32, i32) {
    %c0_i32 = arith.constant 0 : i32
    %c0_i32_0 = arith.constant 0 : i32
    return %c0_i32, %arg0 : i32, i32
  }
}

</mosaic_0001>

<llo_original>
// kernel: tpu_custom_call.1
$region0: #{tpu_custom_call.1}
  #allocation0 [shape = 'u32[]', space=smem, size = 0x4, offset = 0x4, fixed_abs, tag = 'smem constant byte address 0x4 - core index']
  #allocation1 [shape = 'u32[144,128]{1,0:T(1,128)}', space=vmem, size = 0x12000, scoped, tag = 'internal scratch']
  %s0 = inlined_call_operand.vmem [shape: f32[4,512], index: 0, kind: input, shape index: {}]
  %s1 = inlined_call_operand.vmem [shape: f32[88,16], index: 1, kind: input, shape index: {}]
  %s2 = inlined_call_operand.vmem [shape: f32[232,1], index: 2, kind: input, shape index: {}]
  %s3 = inlined_call_operand.hbm [shape: f32[1,512], index: 3, kind: output, shape index: {}]
  %s4 = sld [smem:[#allocation0]]
  $region45: #{tpu_custom_call.1} parent=0
    _
  %s6 = ssub.s32 1, %s4
  %s7 = scalar_select 0, %s6, %s4
  $region1: #{tpu_custom_call.1} parent=0
    #allocation2 [shape = 'u8[2048]{0}', space=vmem, size = 0x800, scoped, tag = 'output window, operand 0']
    #allocation3 [shape = 's32[2]{0}', space=sflag, size = 0x8, scoped, tag = 'scoped memory for tpu_custom_call.1']
    %8 = vsyncpa [#allocation3], 0
    %s9 = scalar_lea.sflag [#allocation3], 1
    %10 = vsyncpa %s9, 0
    loop: start=0, step=1, limit=4
    $region2: #{tpu_custom_call.1} parent=1 // loop_pre_header
      _
    $region3: #{tpu_custom_call.1} parent=1 // loop_header
      %s12 = sphi 0, %s16
      %p13 = scmp.ge.s32.totalorder %s12, 4
      %s22 = sphi 0, %s24
      %s25 = sphi 0, %s22
      %s26 = sphi 0, %s25
      %s42 = sphi 0, %s26
      %s46 = sphi 0, %s46
      %s48 = sphi 0, %s46
      %s49 = sphi 0, %s48
      %s63 = sphi 0, %s49
      %s67 = sphi 0, %s67
      %s69 = sphi 0, %s67
      %s70 = sphi 0, %s69
      %s84 = sphi 0, %s70
      %s90 = sphi 0, %s92
      %s93 = sphi 0, %s90
      %s94 = sphi 0, %s93
      %s110 = sphi 0, %s94
    $region4: #{tpu_custom_call.1} parent=1 // loop_header_branch
      %15 = sbr.rel (%p13) target = $region8
    $region5: #{tpu_custom_call.1} parent=1 // loop_body
      %s17 = ssub.s32 %s12, 1
      %s18 = ssub.s32 %s12, 2
      %s19 = sadd.s32 %s12, 1
      %s20 = ssub.s32 %s12, %s19
      %p21 = scmp.eq.s32.totalorder %s20, 0
      %s23 = sadd.s32 %s22, 1
      %s24 = scalar_select %p21, %s22, %s23
      %p27 = pneg %p21
      %p28 = scmp.eq.s32.totalorder %s12, 1
      %p29 = por %p27, %p28
      %p30 = scmp.ne.s32.totalorder %s22, %s25
      %p31 = scmp.eq.s32.totalorder %s12, 0
      %p32 = por %p30, %p31
      %p33 = scmp.ne.s32.totalorder %s22, %s25
      %p34 = scmp.eq.s32.totalorder %s17, 1
      %p35 = por %p33, %p34
      %p36 = scmp.ne.s32.totalorder %s25, %s26
      %p37 = scmp.eq.s32.totalorder %s17, 0
      %p38 = por %p36, %p37
      %p39 = scmp.ne.s32.totalorder %s25, %s26
      %p40 = scmp.eq.s32.totalorder %s18, 1
      %p41 = por %p39, %p40
      %p43 = scmp.ne.s32.totalorder %s26, %s42
      %p44 = scmp.eq.s32.totalorder %s18, 0
      %p45 = por %p43, %p44
      %s47 = sadd.s32 %s46, 1
      %p50 = scmp.eq.s32.totalorder %s12, 1
      %p51 = scmp.ne.s32.totalorder %s46, %s48
      %p52 = scmp.eq.s32.totalorder %s12, 0
      %p53 = por %p51, %p52
      %p54 = scmp.ne.s32.totalorder %s46, %s48
      %p55 = scmp.eq.s32.totalorder %s17, 1
      %p56 = por %p54, %p55
      %p57 = scmp.ne.s32.totalorder %s48, %s49
      %p58 = scmp.eq.s32.totalorder %s17, 0
      %p59 = por %p57, %p58
      %p60 = scmp.ne.s32.totalorder %s48, %s49
      %p61 = scmp.eq.s32.totalorder %s18, 1
      %p62 = por %p60, %p61
      %p64 = scmp.ne.s32.totalorder %s49, %s63
      %p65 = scmp.eq.s32.totalorder %s18, 0
      %p66 = por %p64, %p65
      %s68 = sadd.s32 %s67, 1
      %p71 = scmp.eq.s32.totalorder %s12, 1
      %p72 = scmp.ne.s32.totalorder %s67, %s69
      %p73 = scmp.eq.s32.totalorder %s12, 0
      %p74 = por %p72, %p73
      %p75 = scmp.ne.s32.totalorder %s67, %s69
      %p76 = scmp.eq.s32.totalorder %s17, 1
      %p77 = por %p75, %p76
      %p78 = scmp.ne.s32.totalorder %s69, %s70
      %p79 = scmp.eq.s32.totalorder %s17, 0
      %p80 = por %p78, %p79
      %p81 = scmp.ne.s32.totalorder %s69, %s70
      %p82 = scmp.eq.s32.totalorder %s18, 1
      %p83 = por %p81, %p82
      %p85 = scmp.ne.s32.totalorder %s70, %s84
      %p86 = scmp.eq.s32.totalorder %s18, 0
      %p87 = por %p85, %p86
      %s88 = ssub.s32 %s12, %s19
      %p89 = scmp.eq.s32.totalorder %s88, 0
      %s91 = sadd.s32 %s90, 1
      %s92 = scalar_select %p89, %s90, %s91
      %p95 = pneg %p89
      %p96 = scmp.eq.s32.totalorder %s12, 1
      %p97 = por %p95, %p96
      %p98 = scmp.ne.s32.totalorder %s90, %s93
      %p99 = scmp.eq.s32.totalorder %s12, 0
      %p100 = por %p98, %p99
      %p101 = scmp.ne.s32.totalorder %s90, %s93
      %p102 = scmp.eq.s32.totalorder %s17, 1
      %p103 = por %p101, %p102
      %p104 = scmp.ne.s32.totalorder %s93, %s94
      %p105 = scmp.eq.s32.totalorder %s17, 0
      %p106 = por %p104, %p105
      %p107 = scmp.ne.s32.totalorder %s93, %s94
      %p108 = scmp.eq.s32.totalorder %s18, 1
      %p109 = por %p107, %p108
      %p111 = scmp.ne.s32.totalorder %s94, %s110
      %p112 = scmp.eq.s32.totalorder %s18, 0
      %p113 = por %p111, %p112
      %p114 = scmp.le.s32.totalorder 1, %s12
      %p115 = scmp.lt.s32.totalorder %s12, 3
      %p116 = pnand %p114, %p115
      %p117 = pneg %p116
      // Predicated region
      $region9: #{tpu_custom_call.1} parent=5 // pred_check
        _
      $region10: #{tpu_custom_call.1} parent=5 // pred_check_branch
        %119 = sbr.rel (%p116) target = $region12
      $region11: #{tpu_custom_call.1} parent=5 // pred_region
        %s120 = ssub.s32 %s12, 1
        // Predicated region
        $region13: #{tpu_custom_call.1} parent=11 // pred_check
          %p121 = pneg %p59
        $region14: #{tpu_custom_call.1} parent=11 // pred_check_branch
          %123 = sbr.rel (%p121) target = $region16
        $region15: #{tpu_custom_call.1} parent=11 // pred_region
          _
        $region16: #{tpu_custom_call.1} parent=11 // pred_fallthru
          _
        // Predicated region
        $region17: #{tpu_custom_call.1} parent=11 // pred_check
          %p124 = pneg %p80
        $region18: #{tpu_custom_call.1} parent=11 // pred_check_branch
          %126 = sbr.rel (%p124) target = $region20
        $region19: #{tpu_custom_call.1} parent=11 // pred_region
          _
        $region20: #{tpu_custom_call.1} parent=11 // pred_fallthru
          _
      $region12: #{tpu_custom_call.1} parent=5 // pred_fallthru
        _
      %p127 = scmp.lt.s32.totalorder %s12, 2
      // Predicated region
      $region21: #{tpu_custom_call.1} parent=5 // pred_check
        %p128 = pneg %p127
      $region22: #{tpu_custom_call.1} parent=5 // pred_check_branch
        %130 = sbr.rel (%p128) target = $region24
      $region23: #{tpu_custom_call.1} parent=5 // pred_region
        // Predicated region
        $region25: #{tpu_custom_call.1} parent=23 // pred_check
          %p131 = pneg %p32
        $region26: #{tpu_custom_call.1} parent=23 // pred_check_branch
          %133 = sbr.rel (%p131) target = $region28
        $region27: #{tpu_custom_call.1} parent=23 // pred_region
          %s134 = smul.u32 2, %s12
          %p135 = scmp.lt.s32.totalorder %s134, 3
          %s136 = scalar_select %p135, %s134, 3
          %s137 = smul.addr %s136, 4
          %s138 = scalar_lea.vmem %s0, %s137
          %s139 = smul.u32 2, %s12
        $region28: #{tpu_custom_call.1} parent=23 // pred_fallthru
          _
      $region24: #{tpu_custom_call.1} parent=5 // pred_fallthru
        _
      %p140 = scmp.le.s32.totalorder 1, %s12
      %p141 = scmp.lt.s32.totalorder %s12, 3
      %p142 = pnand %p140, %p141
      %p143 = pneg %p142
      // Predicated region
      $region29: #{tpu_custom_call.1} parent=5 // pred_check
        _
      $region30: #{tpu_custom_call.1} parent=5 // pred_check_branch
        %145 = sbr.rel (%p142) target = $region32
      $region31: #{tpu_custom_call.1} parent=5 // pred_region
        %s146 = ssub.s32 %s12, 1
        %s147 = smul.u32 2, %s17
        %p148 = scmp.lt.s32.totalorder %s147, 3
        %s149 = scalar_select %p148, %s147, 3
        %s150 = smul.addr %s149, 4
        %s151 = scalar_lea.vmem %s0, %s150
        %p152 = pneg %p38
        %p153 = pneg %p35
        %p154 = pneg %p59
        %p155 = pneg %p56
        %p156 = pneg %p80
        %p157 = pneg %p77
        %p158 = pneg %p106
        %p159 = pneg %p103
        %s160 = sand.u32 %s93, 1
        %s161 = scalar_lea.sflag [#allocation3], %s160
        %s162 = sand.u32 %s93, 1
        %s163 = smul.addr %s162, 2
        %s164 = scalar_lea.vmem [#allocation2], %s163
        %s165 = smul.u32 2, %s17
        %p166 = scmp.lt.s32.totalorder %s165, 3
        %s167 = scalar_select %p166, %s165, 3
        %s168 = smul.addr %s167, 4
        %s169 = scalar_lea.vmem %s0, %s168
        %s170 = smul.u32 2, %s17
        %s171 = smul.u32 2, %s17
        %v172 = vld [vmem:[%s169] ss:$4 sm:$0x3]
        %s173 = scalar_lea.vmem %s169, 1
        %v174 = vld [vmem:[%s173] ss:$4 sm:$0x3]
        %s175 = scalar_lea.vmem %s169, 2
        %v176 = vld [vmem:[%s175] ss:$4 sm:$0x3]
        %s177 = scalar_lea.vmem %s169, 3
        %v178 = vld [vmem:[%s177] ss:$4 sm:$0x3]
        %v179 = vld [vmem:[%s1] sm:$0xff]
        %v180 = vld [vmem:[%s1 + $0x8] sm:$0xff]
        %v181 = vld [vmem:[%s1 + $0x10] sm:$0xff]
        %v182 = vld [vmem:[%s1 + $0x18] sm:$0xff]
        %v183 = vld [vmem:[%s1 + $0x20] sm:$0xff]
        %v184 = vld [vmem:[%s1 + $0x28] sm:$0xff]
        %v185 = vld [vmem:[%s1 + $0x30] sm:$0xff]
        %v186 = vld [vmem:[%s1 + $0x38] sm:$0xff]
        %v187 = vld [vmem:[%s1 + $0x40] sm:$0xff]
        %v188 = vld [vmem:[%s1 + $0x48] sm:$0xff]
        %v189 = vld [vmem:[%s1 + $0x50] sm:$0xff]
        %v190 = vld [vmem:[%s2] sm:$0xff]
        %v191 = vld [vmem:[%s2 + $0x8] sm:$0xff]
        %v192 = vld [vmem:[%s2 + $0x10] sm:$0xff]
        %v193 = vld [vmem:[%s2 + $0x18] sm:$0xff]
        %v194 = vld [vmem:[%s2 + $0x20] sm:$0xff]
        %v195 = vld [vmem:[%s2 + $0x28] sm:$0xff]
        %v196 = vld [vmem:[%s2 + $0x30] sm:$0xff]
        %v197 = vld [vmem:[%s2 + $0x38] sm:$0xff]
        %v198 = vld [vmem:[%s2 + $0x40] sm:$0xff]
        %v199 = vld [vmem:[%s2 + $0x48] sm:$0xff]
        %v200 = vld [vmem:[%s2 + $0x50] sm:$0xff]
        %v201 = vld [vmem:[%s2 + $0x58] sm:$0xff]
        %v202 = vld [vmem:[%s2 + $0x60] sm:$0xff]
        %v203 = vld [vmem:[%s2 + $0x68] sm:$0xff]
        %v204 = vld [vmem:[%s2 + $0x70] sm:$0xff]
        %v205 = vld [vmem:[%s2 + $0x78] sm:$0xff]
        %v206 = vld [vmem:[%s2 + $0x80] sm:$0xff]
        %v207 = vld [vmem:[%s2 + $0x88] sm:$0xff]
        %v208 = vld [vmem:[%s2 + $0x90] sm:$0xff]
        %v209 = vld [vmem:[%s2 + $0x98] sm:$0xff]
        %v210 = vld [vmem:[%s2 + $0xa0] sm:$0xff]
        %v211 = vld [vmem:[%s2 + $0xa8] sm:$0xff]
        %v212 = vld [vmem:[%s2 + $0xb0] sm:$0xff]
        %v213 = vld [vmem:[%s2 + $0xb8] sm:$0xff]
        %v214 = vld [vmem:[%s2 + $0xc0] sm:$0xff]
        %v215 = vld [vmem:[%s2 + $0xc8] sm:$0xff]
        %v216 = vld [vmem:[%s2 + $0xd0] sm:$0xff]
        %v217 = vld [vmem:[%s2 + $0xd8] sm:$0xff]
        %v218 = vld [vmem:[%s2 + $0xe0] sm:$0xff]
        %220 = vset.pattern.permute.xlu0 0
        %221 = vperm.xlu0 %220, %v190
        %v222 = vpop.permute.xlu0 %221
        %225 = vset.pattern.permute.xlu0 0
        %226 = vperm.xlu0 %225, %v191
        %v227 = vpop.permute.xlu0 %226
        %v230 = vlaneseq
        %v231 = vshrl.u32 %v230, 7
        %v232 = vsub.s32 0, %v231
        %v233 = vrot.slane %v172, %v232
        %v234 = vlaneseq
        %v235 = vshrl.u32 %v234, 7
        %v236 = vsub.s32 1, %v235
        %v237 = vrot.slane %v172, %v236
        %v240 = vmul.f32 %v222, %v233
        %v241 = vmul.f32 %v222, %v237
        %v242 = vmul.f32 %v227, %v233
        %v243 = vmul.f32 %v227, %v237
        %245 = vset.pattern.permute.xlu0 0
        %246 = vperm.xlu0 %245, %v192
        %v247 = vpop.permute.xlu0 %246
        %250 = vset.pattern.permute.xlu0 0
        %251 = vperm.xlu0 %250, %v193
        %v252 = vpop.permute.xlu0 %251
        %v255 = vlaneseq
        %v256 = vshrl.u32 %v255, 7
        %v257 = vsub.s32 0, %v256
        %v258 = vrot.slane %v174, %v257
        %v259 = vlaneseq
        %v260 = vshrl.u32 %v259, 7
        %v261 = vsub.s32 1, %v260
        %v262 = vrot.slane %v174, %v261
        %v265 = vmul.f32 %v247, %v258
        %v266 = vmul.f32 %v247, %v262
        %v267 = vmul.f32 %v252, %v258
        %v268 = vmul.f32 %v252, %v262
        %v269 = vadd.f32 %v240, %v265
        %v270 = vadd.f32 %v241, %v266
        %v271 = vadd.f32 %v242, %v267
        %v272 = vadd.f32 %v243, %v268
        %274 = vset.pattern.permute.xlu0 0
        %275 = vperm.xlu0 %274, %v194
        %v276 = vpop.permute.xlu0 %275
        %279 = vset.pattern.permute.xlu0 0
        %280 = vperm.xlu0 %279, %v195
        %v281 = vpop.permute.xlu0 %280
        %v283 = vadd.f32 %v269, %v276
        %v284 = vadd.f32 %v270, %v276
        %v285 = vadd.f32 %v271, %v281
        %v286 = vadd.f32 %v272, %v281
        %v287 = vmax.f32 %v283, 0.0
        %v288 = vmax.f32 %v284, 0.0
        %v289 = vmax.f32 %v285, 0.0
        %v290 = vmax.f32 %v286, 0.0
        %v291 = vand.u32 2147483647, %v283
        %v292 = vand.u32 2147483647, %v284
        %v293 = vand.u32 2147483647, %v285
        %v294 = vand.u32 2147483647, %v286
        %v295 = vsub.f32 0.0, %v291
        %v296 = vsub.f32 0.0, %v292
        %v297 = vsub.f32 0.0, %v293
        %v298 = vsub.f32 0.0, %v294
        %v299 = vmul.f32 %v295, 1.442695
        %v300 = vpow.pop %v299
        %v301 = vmul.f32 %v296, 1.442695
        %v302 = vpow.pop %v301
        %v303 = vmul.f32 %v297, 1.442695
        %v304 = vpow.pop %v303
        %v305 = vmul.f32 %v298, 1.442695
        %v306 = vpow.pop %v305
        %v307 = vadd.f32 %v300, 1.0
        %v308 = vlog2.pop %v307
        %v309 = vmul.f32 %v308, 0.6931472
        %v310 = vmul.f32 -0.5, %v300
        %v311 = vadd.f32 %v310, 1.0
        %v312 = vmul.f32 %v311, %v300
        %v313 = vand.u32 2147483647, %v300
        %vm314 = vcmp.lt.f32.partialorder %v313, 0.0004427343
        %v315 = vsel %vm314, %v312, %v309
        %v316 = vadd.f32 %v302, 1.0
        %v317 = vlog2.pop %v316
        %v318 = vmul.f32 %v317, 0.6931472
        %v319 = vmul.f32 -0.5, %v302
        %v320 = vadd.f32 %v319, 1.0
        %v321 = vmul.f32 %v320, %v302
        %v322 = vand.u32 2147483647, %v302
        %vm323 = vcmp.lt.f32.partialorder %v322, 0.0004427343
        %v324 = vsel %vm323, %v321, %v318
        %v325 = vadd.f32 %v304, 1.0
        %v326 = vlog2.pop %v325
        %v327 = vmul.f32 %v326, 0.6931472
        %v328 = vmul.f32 -0.5, %v304
        %v329 = vadd.f32 %v328, 1.0
        %v330 = vmul.f32 %v329, %v304
        %v331 = vand.u32 2147483647, %v304
        %vm332 = vcmp.lt.f32.partialorder %v331, 0.0004427343
        %v333 = vsel %vm332, %v330, %v327
        %v334 = vadd.f32 %v306, 1.0
        %v335 = vlog2.pop %v334
        %v336 = vmul.f32 %v335, 0.6931472
        %v337 = vmul.f32 -0.5, %v306
        %v338 = vadd.f32 %v337, 1.0
        %v339 = vmul.f32 %v338, %v306
        %v340 = vand.u32 2147483647, %v306
        %vm341 = vcmp.lt.f32.partialorder %v340, 0.0004427343
        %v342 = vsel %vm341, %v339, %v336
        %v343 = vadd.f32 %v287, %v315
        %v344 = vadd.f32 %v288, %v324
        %v345 = vadd.f32 %v289, %v333
        %v346 = vadd.f32 %v290, %v342
        %348 = vset.pattern.permute.xlu0 0
        %349 = vperm.xlu0 %348, %v196
        %v350 = vpop.permute.xlu0 %349
        %353 = vset.pattern.permute.xlu0 0
        %354 = vperm.xlu0 %353, %v197
        %v355 = vpop.permute.xlu0 %354
        %v358 = vlaneseq
        %v359 = vshrl.u32 %v358, 7
        %v360 = vsub.s32 0, %v359
        %v361 = vrot.slane %v176, %v360
        %v362 = vlaneseq
        %v363 = vshrl.u32 %v362, 7
        %v364 = vsub.s32 1, %v363
        %v365 = vrot.slane %v176, %v364
        %v368 = vmul.f32 %v350, %v361
        %v369 = vmul.f32 %v350, %v365
        %v370 = vmul.f32 %v355, %v361
        %v371 = vmul.f32 %v355, %v365
        %373 = vset.pattern.permute.xlu0 0
        %374 = vperm.xlu0 %373, %v198
        %v375 = vpop.permute.xlu0 %374
        %378 = vset.pattern.permute.xlu0 0
        %379 = vperm.xlu0 %378, %v199
        %v380 = vpop.permute.xlu0 %379
        %v383 = vlaneseq
        %v384 = vshrl.u32 %v383, 7
        %v385 = vsub.s32 0, %v384
        %v386 = vrot.slane %v178, %v385
        %v387 = vlaneseq
        %v388 = vshrl.u32 %v387, 7
        %v389 = vsub.s32 1, %v388
        %v390 = vrot.slane %v178, %v389
        %v393 = vmul.f32 %v375, %v386
        %v394 = vmul.f32 %v375, %v390
        %v395 = vmul.f32 %v380, %v386
        %v396 = vmul.f32 %v380, %v390
        %v397 = vadd.f32 %v368, %v393
        %v398 = vadd.f32 %v369, %v394
        %v399 = vadd.f32 %v370, %v395
        %v400 = vadd.f32 %v371, %v396
        %402 = vset.pattern.permute.xlu0 0
        %403 = vperm.xlu0 %402, %v200
        %v404 = vpop.permute.xlu0 %403
        %407 = vset.pattern.permute.xlu0 0
        %408 = vperm.xlu0 %407, %v201
        %v409 = vpop.permute.xlu0 %408
        %v411 = vadd.f32 %v397, %v404
        %v412 = vadd.f32 %v398, %v404
        %v413 = vadd.f32 %v399, %v409
        %v414 = vadd.f32 %v400, %v409
        %vm415 = vcmp.gt.f32.partialorder %v411, 0.0
        %vm416 = vcmp.gt.f32.partialorder %v412, 0.0
        %vm417 = vcmp.gt.f32.partialorder %v413, 0.0
        %vm418 = vcmp.gt.f32.partialorder %v414, 0.0
        %v419 = vmin.f32 %v411, 0.0
        %v420 = vmin.f32 %v412, 0.0
        %v421 = vmin.f32 %v413, 0.0
        %v422 = vmin.f32 %v414, 0.0
        %v423 = vmul.f32 %v419, 1.442695
        %v424 = vpow.pop %v423
        %v425 = vmul.f32 %v420, 1.442695
        %v426 = vpow.pop %v425
        %v427 = vmul.f32 %v421, 1.442695
        %v428 = vpow.pop %v427
        %v429 = vmul.f32 %v422, 1.442695
        %v430 = vpow.pop %v429
        %v431 = vsub.f32 %v424, 1.0
        %v432 = vsub.f32 %v426, 1.0
        %v433 = vsub.f32 %v428, 1.0
        %v434 = vsub.f32 %v430, 1.0
        %v435 = vsel %vm415, %v411, %v431
        %v436 = vsel %vm416, %v412, %v432
        %v437 = vsel %vm417, %v413, %v433
        %v438 = vsel %vm418, %v414, %v434
        %440 = vset.pattern.permute.xlu0 0
        %441 = vperm.xlu0 %440, %v210
        %v442 = vpop.permute.xlu0 %441
        %445 = vset.pattern.permute.xlu0 0
        %446 = vperm.xlu0 %445, %v211
        %v447 = vpop.permute.xlu0 %446
        %450 = vset.pattern.permute.xlu0 0
        %451 = vperm.xlu0 %450, %v212
        %v452 = vpop.permute.xlu0 %451
        %455 = vset.pattern.permute.xlu0 0
        %456 = vperm.xlu0 %455, %v213
        %v457 = vpop.permute.xlu0 %456
        %460 = vset.pattern.permute.xlu0 0
        %461 = vperm.xlu0 %460, %v214
        %v462 = vpop.permute.xlu0 %461
        %465 = vset.pattern.permute.xlu0 0
        %466 = vperm.xlu0 %465, %v215
        %v467 = vpop.permute.xlu0 %466
        %470 = vset.pattern.permute.xlu0 0
        %471 = vperm.xlu0 %470, %v216
        %v472 = vpop.permute.xlu0 %471
        %475 = vset.pattern.permute.xlu0 0
        %476 = vperm.xlu0 %475, %v217
        %v477 = vpop.permute.xlu0 %476
        %480 = vset.pattern.permute.xlu0 0
        %481 = vperm.xlu0 %480, %v218
        %v482 = vpop.permute.xlu0 %481
        %vm484 = vcmask 130048
        %v486 = vsel %vm484, %v179, 0
        %v489 = vsel %vm484, %v180, 0
        %v492 = vsel %vm484, %v181, 0
        %v495 = vsel %vm484, %v182, 0
        %v498 = vsel %vm484, %v183, 0
        %v501 = vsel %vm484, %v184, 0
        %v504 = vsel %vm484, %v185, 0
        %v507 = vsel %vm484, %v186, 0
        %v510 = vsel %vm484, %v187, 0
        %512 = vmatprep.subr.mxu0 %v436
        %513 = vmatpush1.msra.mxu0 %v435
        %514 = vmatprep.subr.mxu0 %v438
        %515 = vmatpush1.msra.mxu0 %v437
        %516 = vmatprep.subr.mxu0 0.0
        %517 = vmatpush1.msra.mxu0 0.0
        %518 = vmatprep.subr.mxu0 0.0
        %519 = vmatpush1.msra.mxu0 0.0
        %520 = vmatprep.subr.mxu0 0.0
        %521 = vmatpush1.msra.mxu0 0.0
        %522 = vmatprep.subr.mxu0 0.0
        %523 = vmatpush1.msra.mxu0 0.0
        %524 = vmatprep.subr.mxu0 0.0
        %525 = vmatpush1.msra.mxu0 0.0
        %526 = vmatprep.subr.mxu0 0.0
        %527 = vmatpush1.msra.mxu0 0.0
        %528 = vmatprep.subr.mxu0 0.0
        %529 = vmatpush1.msra.mxu0 0.0
        %530 = vmatprep.subr.mxu0 0.0
        %531 = vmatpush1.msra.mxu0 0.0
        %532 = vmatprep.subr.mxu0 0.0
        %533 = vmatpush1.msra.mxu0 0.0
        %534 = vmatprep.subr.mxu0 0.0
        %535 = vmatpush1.msra.mxu0 0.0
        %536 = vmatprep.subr.mxu0 0.0
        %537 = vmatpush1.msra.mxu0 0.0
        %538 = vmatprep.subr.mxu0 0.0
        %539 = vmatpush1.msra.mxu0 0.0
        %540 = vmatprep.subr.mxu0 0.0
        %541 = vmatpush1.msra.mxu0 0.0
        %542 = vmatprep.subr.mxu0 0.0
        %543 = vmatpush1.msra.mxu0 0.0
        %544 = vmatprep.subr.mxu0 0.0
        %545 = vmatpush1.msra.mxu0 0.0
        %546 = vmatprep.subr.mxu0 0.0
        %547 = vmatpush1.msra.mxu0 0.0
        %548 = vmatprep.subr.mxu0 0.0
        %549 = vmatpush1.msra.mxu0 0.0
        %550 = vmatprep.subr.mxu0 0.0
        %551 = vmatpush1.msra.mxu0 0.0
        %552 = vmatprep.subr.mxu0 0.0
        %553 = vmatpush1.msra.mxu0 0.0
        %554 = vmatprep.subr.mxu0 0.0
        %555 = vmatpush1.msra.mxu0 0.0
        %556 = vmatprep.subr.mxu0 0.0
        %557 = vmatpush1.msra.mxu0 0.0
        %558 = vmatprep.subr.mxu0 0.0
        %559 = vmatpush1.msra.mxu0 0.0
        %560 = vmatprep.subr.mxu0 0.0
        %561 = vmatpush1.msra.mxu0 0.0
        %562 = vmatprep.subr.mxu0 0.0
        %563 = vmatpush1.msra.mxu0 0.0
        %564 = vmatprep.subr.mxu0 0.0
        %565 = vmatpush1.msra.mxu0 0.0
        %566 = vmatprep.subr.mxu0 0.0
        %567 = vmatpush1.msra.mxu0 0.0
        %568 = vmatprep.subr.mxu0 0.0
        %569 = vmatpush1.msra.mxu0 0.0
        %570 = vmatprep.subr.mxu0 0.0
        %571 = vmatpush1.msra.mxu0 0.0
        %572 = vmatprep.subr.mxu0 0.0
        %573 = vmatpush1.msra.mxu0 0.0
        %574 = vmatprep.subr.mxu0 0.0
        %575 = vmatpush1.msra.mxu0 0.0
        %576 = vmatprep.mubr.f32.mxu0 0.0
        %577 = vmatmul.mubr.f32.gmra.mrb[0].mxu0 %v486
        %v578 = vpop.f32.mrb[0].mxu0
        %v579 = vadd.f32 %v442, %v578
        %v580 = vpop.f32.mrb[0].mxu0
        %v581 = vadd.f32 %v442, %v580
        %582 = vmatprep.mubr.f32.mxu0 0.0
        %583 = vmatmul.mubr.f32.gmra.mrb[0].mxu0 %v489
        %v584 = vpop.f32.mrb[0].mxu0
        %v585 = vadd.f32 %v447, %v584
        %v586 = vpop.f32.mrb[0].mxu0
        %v587 = vadd.f32 %v447, %v586
        %588 = vmatprep.mubr.f32.mxu0 0.0
        %589 = vmatmul.mubr.f32.gmra.mrb[0].mxu0 %v492
        %v590 = vpop.f32.mrb[0].mxu0
        %v591 = vadd.f32 %v452, %v590
        %v592 = vpop.f32.mrb[0].mxu0
        %v593 = vadd.f32 %v452, %v592
        %594 = vmatprep.mubr.f32.mxu0 0.0
        %595 = vmatmul.mubr.f32.gmra.mrb[0].mxu0 %v495
        %v596 = vpop.f32.mrb[0].mxu0
        %v597 = vadd.f32 %v457, %v596
        %v598 = vpop.f32.mrb[0].mxu0
        %v599 = vadd.f32 %v457, %v598
        %600 = vmatprep.mubr.f32.mxu0 0.0
        %601 = vmatmul.mubr.f32.gmra.mrb[0].mxu0 %v498
        %v602 = vpop.f32.mrb[0].mxu0
        %v603 = vadd.f32 %v462, %v602
        %v604 = vpop.f32.mrb[0].mxu0
        %v605 = vadd.f32 %v462, %v604
        %606 = vmatprep.mubr.f32.mxu0 0.0
        %607 = vmatmul.mubr.f32.gmra.mrb[0].mxu0 %v501
        %v608 = vpop.f32.mrb[0].mxu0
        %v609 = vadd.f32 %v467, %v608
        %v610 = vpop.f32.mrb[0].mxu0
        %v611 = vadd.f32 %v467, %v610
        %612 = vmatprep.mubr.f32.mxu0 0.0
        %613 = vmatmul.mubr.f32.gmra.mrb[0].mxu0 %v504
        %v614 = vpop.f32.mrb[0].mxu0
        %v615 = vadd.f32 %v472, %v614
        %v616 = vpop.f32.mrb[0].mxu0
        %v617 = vadd.f32 %v472, %v616
        %618 = vmatprep.mubr.f32.mxu0 0.0
        %619 = vmatmul.mubr.f32.gmra.mrb[0].mxu0 %v507
        %v620 = vpop.f32.mrb[0].mxu0
        %v621 = vadd.f32 %v477, %v620
        %v622 = vpop.f32.mrb[0].mxu0
        %v623 = vadd.f32 %v477, %v622
        %624 = vmatprep.mubr.f32.mxu0 0.0
        %625 = vmatmul.mubr.f32.gmra.mrb[0].mxu0 %v510
        %v626 = vpop.f32.mrb[0].mxu0
        %v627 = vadd.f32 %v482, %v626
        %v628 = vpop.f32.mrb[0].mxu0
        %v629 = vadd.f32 %v482, %v628
        %630 = vdwg.mxu0
        %v631 = vmax.f32 %v579, 0.0
        %v632 = vmax.f32 %v581, 0.0
        %v633 = vmax.f32 %v585, 0.0
        %v634 = vmax.f32 %v587, 0.0
        %v635 = vand.u32 2147483647, %v579
        %v636 = vand.u32 2147483647, %v581
        %v637 = vand.u32 2147483647, %v585
        %v638 = vand.u32 2147483647, %v587
        %v639 = vsub.f32 0.0, %v635
        %v640 = vsub.f32 0.0, %v636
        %v641 = vsub.f32 0.0, %v637
        %v642 = vsub.f32 0.0, %v638
        %v643 = vmul.f32 %v639, 1.442695
        %v644 = vpow.pop %v643
        %v645 = vmul.f32 %v640, 1.442695
        %v646 = vpow.pop %v645
        %v647 = vmul.f32 %v641, 1.442695
        %v648 = vpow.pop %v647
        %v649 = vmul.f32 %v642, 1.442695
        %v650 = vpow.pop %v649
        %v651 = vadd.f32 %v644, 1.0
        %v652 = vlog2.pop %v651
        %v653 = vmul.f32 %v652, 0.6931472
        %v654 = vmul.f32 -0.5, %v644
        %v655 = vadd.f32 %v654, 1.0
        %v656 = vmul.f32 %v655, %v644
        %v657 = vand.u32 2147483647, %v644
        %vm658 = vcmp.lt.f32.partialorder %v657, 0.0004427343
        %v659 = vsel %vm658, %v656, %v653
        %v660 = vadd.f32 %v646, 1.0
        %v661 = vlog2.pop %v660
        %v662 = vmul.f32 %v661, 0.6931472
        %v663 = vmul.f32 -0.5, %v646
        %v664 = vadd.f32 %v663, 1.0
        %v665 = vmul.f32 %v664, %v646
        %v666 = vand.u32 2147483647, %v646
        %vm667 = vcmp.lt.f32.partialorder %v666, 0.0004427343
        %v668 = vsel %vm667, %v665, %v662
        %v669 = vadd.f32 %v648, 1.0
        %v670 = vlog2.pop %v669
        %v671 = vmul.f32 %v670, 0.6931472
        %v672 = vmul.f32 -0.5, %v648
        %v673 = vadd.f32 %v672, 1.0
        %v674 = vmul.f32 %v673, %v648
        %v675 = vand.u32 2147483647, %v648
        %vm676 = vcmp.lt.f32.partialorder %v675, 0.0004427343
        %v677 = vsel %vm676, %v674, %v671
        %v678 = vadd.f32 %v650, 1.0
        %v679 = vlog2.pop %v678
        %v680 = vmul.f32 %v679, 0.6931472
        %v681 = vmul.f32 -0.5, %v650
        %v682 = vadd.f32 %v681, 1.0
        %v683 = vmul.f32 %v682, %v650
        %v684 = vand.u32 2147483647, %v650
        %vm685 = vcmp.lt.f32.partialorder %v684, 0.0004427343
        %v686 = vsel %vm685, %v683, %v680
        %v687 = vadd.f32 %v631, %v659
        %v688 = vadd.f32 %v632, %v668
        %v689 = vadd.f32 %v633, %v677
        %v690 = vadd.f32 %v634, %v686
        %v691 = vmax.f32 %v603, 0.0
        %v692 = vmax.f32 %v605, 0.0
        %v693 = vmax.f32 %v609, 0.0
        %v694 = vmax.f32 %v611, 0.0
        %v695 = vand.u32 2147483647, %v603
        %v696 = vand.u32 2147483647, %v605
        %v697 = vand.u32 2147483647, %v609
        %v698 = vand.u32 2147483647, %v611
        %v699 = vsub.f32 0.0, %v695
        %v700 = vsub.f32 0.0, %v696
        %v701 = vsub.f32 0.0, %v697
        %v702 = vsub.f32 0.0, %v698
        %v703 = vmul.f32 %v699, 1.442695
        %v704 = vpow.pop %v703
        %v705 = vmul.f32 %v700, 1.442695
        %v706 = vpow.pop %v705
        %v707 = vmul.f32 %v701, 1.442695
        %v708 = vpow.pop %v707
        %v709 = vmul.f32 %v702, 1.442695
        %v710 = vpow.pop %v709
        %v711 = vadd.f32 %v704, 1.0
        %v712 = vlog2.pop %v711
        %v713 = vmul.f32 %v712, 0.6931472
        %v714 = vmul.f32 -0.5, %v704
        %v715 = vadd.f32 %v714, 1.0
        %v716 = vmul.f32 %v715, %v704
        %v717 = vand.u32 2147483647, %v704
        %vm718 = vcmp.lt.f32.partialorder %v717, 0.0004427343
        %v719 = vsel %vm718, %v716, %v713
        %v720 = vadd.f32 %v706, 1.0
        %v721 = vlog2.pop %v720
        %v722 = vmul.f32 %v721, 0.6931472
        %v723 = vmul.f32 -0.5, %v706
        %v724 = vadd.f32 %v723, 1.0
        %v725 = vmul.f32 %v724, %v706
        %v726 = vand.u32 2147483647, %v706
        %vm727 = vcmp.lt.f32.partialorder %v726, 0.0004427343
        %v728 = vsel %vm727, %v725, %v722
        %v729 = vadd.f32 %v708, 1.0
        %v730 = vlog2.pop %v729
        %v731 = vmul.f32 %v730, 0.6931472
        %v732 = vmul.f32 -0.5, %v708
        %v733 = vadd.f32 %v732, 1.0
        %v734 = vmul.f32 %v733, %v708
        %v735 = vand.u32 2147483647, %v708
        %vm736 = vcmp.lt.f32.partialorder %v735, 0.0004427343
        %v737 = vsel %vm736, %v734, %v731
        %v738 = vadd.f32 %v710, 1.0
        %v739 = vlog2.pop %v738
        %v740 = vmul.f32 %v739, 0.6931472
        %v741 = vmul.f32 -0.5, %v710
        %v742 = vadd.f32 %v741, 1.0
        %v743 = vmul.f32 %v742, %v710
        %v744 = vand.u32 2147483647, %v710
        %vm745 = vcmp.lt.f32.partialorder %v744, 0.0004427343
        %v746 = vsel %vm745, %v743, %v740
        %v747 = vadd.f32 %v691, %v719
        %v748 = vadd.f32 %v692, %v728
        %v749 = vadd.f32 %v693, %v737
        %v750 = vadd.f32 %v694, %v746
        %v751 = vmax.f32 %v615, 0.0
        %v752 = vmax.f32 %v617, 0.0
        %v753 = vmax.f32 %v621, 0.0
        %v754 = vmax.f32 %v623, 0.0
        %v755 = vand.u32 2147483647, %v615
        %v756 = vand.u32 2147483647, %v617
        %v757 = vand.u32 2147483647, %v621
        %v758 = vand.u32 2147483647, %v623
        %v759 = vsub.f32 0.0, %v755
        %v760 = vsub.f32 0.0, %v756
        %v761 = vsub.f32 0.0, %v757
        %v762 = vsub.f32 0.0, %v758
        %v763 = vmul.f32 %v759, 1.442695
        %v764 = vpow.pop %v763
        %v765 = vmul.f32 %v760, 1.442695
        %v766 = vpow.pop %v765
        %v767 = vmul.f32 %v761, 1.442695
        %v768 = vpow.pop %v767
        %v769 = vmul.f32 %v762, 1.442695
        %v770 = vpow.pop %v769
        %v771 = vadd.f32 %v764, 1.0
        %v772 = vlog2.pop %v771
        %v773 = vmul.f32 %v772, 0.6931472
        %v774 = vmul.f32 -0.5, %v764
        %v775 = vadd.f32 %v774, 1.0
        %v776 = vmul.f32 %v775, %v764
        %v777 = vand.u32 2147483647, %v764
        %vm778 = vcmp.lt.f32.partialorder %v777, 0.0004427343
        %v779 = vsel %vm778, %v776, %v773
        %v780 = vadd.f32 %v766, 1.0
        %v781 = vlog2.pop %v780
        %v782 = vmul.f32 %v781, 0.6931472
        %v783 = vmul.f32 -0.5, %v766
        %v784 = vadd.f32 %v783, 1.0
        %v785 = vmul.f32 %v784, %v766
        %v786 = vand.u32 2147483647, %v766
        %vm787 = vcmp.lt.f32.partialorder %v786, 0.0004427343
        %v788 = vsel %vm787, %v785, %v782
        %v789 = vadd.f32 %v768, 1.0
        %v790 = vlog2.pop %v789
        %v791 = vmul.f32 %v790, 0.6931472
        %v792 = vmul.f32 -0.5, %v768
        %v793 = vadd.f32 %v792, 1.0
        %v794 = vmul.f32 %v793, %v768
        %v795 = vand.u32 2147483647, %v768
        %vm796 = vcmp.lt.f32.partialorder %v795, 0.0004427343
        %v797 = vsel %vm796, %v794, %v791
        %v798 = vadd.f32 %v770, 1.0
        %v799 = vlog2.pop %v798
        %v800 = vmul.f32 %v799, 0.6931472
        %v801 = vmul.f32 -0.5, %v770
        %v802 = vadd.f32 %v801, 1.0
        %v803 = vmul.f32 %v802, %v770
        %v804 = vand.u32 2147483647, %v770
        %vm805 = vcmp.lt.f32.partialorder %v804, 0.0004427343
        %v806 = vsel %vm805, %v803, %v800
        %v807 = vadd.f32 %v751, %v779
        %v808 = vadd.f32 %v752, %v788
        %v809 = vadd.f32 %v753, %v797
        %v810 = vadd.f32 %v754, %v806
        %v811 = vmul.f32 %v343, %v687
        %v812 = vmul.f32 %v344, %v688
        %v813 = vmul.f32 %v345, %v689
        %v814 = vmul.f32 %v346, %v690
        %v816 = vsel %vm484, %v188, 0
        %v819 = vsel %vm484, %v189, 0
        %821 = vmatprep.subr.mxu0 %v812
        %822 = vmatpush1.msra.mxu0 %v811
        %823 = vmatprep.subr.mxu0 %v814
        %824 = vmatpush1.msra.mxu0 %v813
        %825 = vmatprep.subr.mxu0 0.0
        %826 = vmatpush1.msra.mxu0 0.0
        %827 = vmatprep.subr.mxu0 0.0
        %828 = vmatpush1.msra.mxu0 0.0
        %829 = vmatprep.subr.mxu0 0.0
        %830 = vmatpush1.msra.mxu0 0.0
        %831 = vmatprep.subr.mxu0 0.0
        %832 = vmatpush1.msra.mxu0 0.0
        %833 = vmatprep.subr.mxu0 0.0
        %834 = vmatpush1.msra.mxu0 0.0
        %835 = vmatprep.subr.mxu0 0.0
        %836 = vmatpush1.msra.mxu0 0.0
        %837 = vmatprep.subr.mxu0 0.0
        %838 = vmatpush1.msra.mxu0 0.0
        %839 = vmatprep.subr.mxu0 0.0
        %840 = vmatpush1.msra.mxu0 0.0
        %841 = vmatprep.subr.mxu0 0.0
        %842 = vmatpush1.msra.mxu0 0.0
        %843 = vmatprep.subr.mxu0 0.0
        %844 = vmatpush1.msra.mxu0 0.0
        %845 = vmatprep.subr.mxu0 0.0
        %846 = vmatpush1.msra.mxu0 0.0
        %847 = vmatprep.subr.mxu0 0.0
        %848 = vmatpush1.msra.mxu0 0.0
        %849 = vmatprep.subr.mxu0 0.0
        %850 = vmatpush1.msra.mxu0 0.0
        %851 = vmatprep.subr.mxu0 0.0
        %852 = vmatpush1.msra.mxu0 0.0
        %853 = vmatprep.subr.mxu0 0.0
        %854 = vmatpush1.msra.mxu0 0.0
        %855 = vmatprep.subr.mxu0 0.0
        %856 = vmatpush1.msra.mxu0 0.0
        %857 = vmatprep.subr.mxu0 0.0
        %858 = vmatpush1.msra.mxu0 0.0
        %859 = vmatprep.subr.mxu0 0.0
        %860 = vmatpush1.msra.mxu0 0.0
        %861 = vmatprep.subr.mxu0 0.0
        %862 = vmatpush1.msra.mxu0 0.0
        %863 = vmatprep.subr.mxu0 0.0
        %864 = vmatpush1.msra.mxu0 0.0
        %865 = vmatprep.subr.mxu0 0.0
        %866 = vmatpush1.msra.mxu0 0.0
        %867 = vmatprep.subr.mxu0 0.0
        %868 = vmatpush1.msra.mxu0 0.0
        %869 = vmatprep.subr.mxu0 0.0
        %870 = vmatpush1.msra.mxu0 0.0
        %871 = vmatprep.subr.mxu0 0.0
        %872 = vmatpush1.msra.mxu0 0.0
        %873 = vmatprep.subr.mxu0 0.0
        %874 = vmatpush1.msra.mxu0 0.0
        %875 = vmatprep.subr.mxu0 0.0
        %876 = vmatpush1.msra.mxu0 0.0
        %877 = vmatprep.subr.mxu0 0.0
        %878 = vmatpush1.msra.mxu0 0.0
        %879 = vmatprep.subr.mxu0 0.0
        %880 = vmatpush1.msra.mxu0 0.0
        %881 = vmatprep.subr.mxu0 0.0
        %882 = vmatpush1.msra.mxu0 0.0
        %883 = vmatprep.subr.mxu0 0.0
        %884 = vmatpush1.msra.mxu0 0.0
        %885 = vmatprep.mubr.f32.mxu0 0.0
        %886 = vmatmul.mubr.f32.gmra.mrb[0].mxu0 %v816
        %v887 = vpop.f32.mrb[0].mxu0
        %v888 = vadd.f32 %v591, %v887
        %v889 = vpop.f32.mrb[0].mxu0
        %v890 = vadd.f32 %v593, %v889
        %891 = vmatprep.mubr.f32.mxu0 0.0
        %892 = vmatmul.mubr.f32.gmra.mrb[0].mxu0 %v819
        %v893 = vpop.f32.mrb[0].mxu0
        %v894 = vadd.f32 %v597, %v893
        %v895 = vpop.f32.mrb[0].mxu0
        %v896 = vadd.f32 %v599, %v895
        %897 = vdwg.mxu0
        %v900 = vcombine.low %v627, %v629
        %v902 = vunpack.c.l.s4 1966171168
        %v903 = vunpack.c.0.s8 %v902
        %v904 = vlaneseq
        %v905 = vshrl.u32 %v904, 7
        %v906 = vsub.s32 %v903, %v905
        %v907 = vrot.slane %v900, %v906
        %v909 = vunpack.c.l.s4 1966171168
        %v910 = vunpack.c.0.s8 %v909
        %v911 = vlaneseq
        %v912 = vshrl.u32 %v911, 7
        %v913 = vsub.s32 %v910, %v912
        %v914 = vrot.slane %v907, %v913
        %v916 = vmul.f32 %v172, %v914
        %918 = vset.pattern.permute.xlu0 0
        %919 = vperm.xlu0 %918, %v202
        %v920 = vpop.permute.xlu0 %919
        %923 = vset.pattern.permute.xlu0 0
        %924 = vperm.xlu0 %923, %v203
        %v925 = vpop.permute.xlu0 %924
        %v928 = vlaneseq
        %v929 = vshrl.u32 %v928, 7
        %v930 = vsub.s32 0, %v929
        %v931 = vrot.slane %v916, %v930
        %v932 = vlaneseq
        %v933 = vshrl.u32 %v932, 7
        %v934 = vsub.s32 1, %v933
        %v935 = vrot.slane %v916, %v934
        %v938 = vmul.f32 %v920, %v931
        %v939 = vmul.f32 %v920, %v935
        %v940 = vmul.f32 %v925, %v931
        %v941 = vmul.f32 %v925, %v935
        %v942 = vadd.f32 %v888, %v938
        %v943 = vadd.f32 %v890, %v939
        %v944 = vadd.f32 %v894, %v940
        %v945 = vadd.f32 %v896, %v941
        %v946 = vcombine.high %v907, %v907
        %v948 = vunpack.c.l.s4 1966171168
        %v949 = vunpack.c.0.s8 %v948
        %v950 = vlaneseq
        %v951 = vshrl.u32 %v950, 7
        %v952 = vsub.s32 %v949, %v951
        %v953 = vrot.slane %v946, %v952
        %v955 = vmul.f32 %v174, %v953
        %957 = vset.pattern.permute.xlu0 0
        %958 = vperm.xlu0 %957, %v204
        %v959 = vpop.permute.xlu0 %958
        %962 = vset.pattern.permute.xlu0 0
        %963 = vperm.xlu0 %962, %v205
        %v964 = vpop.permute.xlu0 %963
        %v967 = vlaneseq
        %v968 = vshrl.u32 %v967, 7
        %v969 = vsub.s32 0, %v968
        %v970 = vrot.slane %v955, %v969
        %v971 = vlaneseq
        %v972 = vshrl.u32 %v971, 7
        %v973 = vsub.s32 1, %v972
        %v974 = vrot.slane %v955, %v973
        %v977 = vmul.f32 %v959, %v970
        %v978 = vmul.f32 %v959, %v974
        %v979 = vmul.f32 %v964, %v970
        %v980 = vmul.f32 %v964, %v974
        %v981 = vadd.f32 %v942, %v977
        %v982 = vadd.f32 %v943, %v978
        %v983 = vadd.f32 %v944, %v979
        %v984 = vadd.f32 %v945, %v980
        %v985 = vmax.f32 %v981, 0.0
        %v986 = vmax.f32 %v982, 0.0
        %v987 = vmax.f32 %v983, 0.0
        %v988 = vmax.f32 %v984, 0.0
        %v989 = vand.u32 2147483647, %v981
        %v990 = vand.u32 2147483647, %v982
        %v991 = vand.u32 2147483647, %v983
        %v992 = vand.u32 2147483647, %v984
        %v993 = vsub.f32 0.0, %v989
        %v994 = vsub.f32 0.0, %v990
        %v995 = vsub.f32 0.0, %v991
        %v996 = vsub.f32 0.0, %v992
        %v997 = vmul.f32 %v993, 1.442695
        %v998 = vpow.pop %v997
        %v999 = vmul.f32 %v994, 1.442695
        %v1000 = vpow.pop %v999
        %v1001 = vmul.f32 %v995, 1.442695
        %v1002 = vpow.pop %v1001
        %v1003 = vmul.f32 %v996, 1.442695
        %v1004 = vpow.pop %v1003
        %v1005 = vadd.f32 %v998, 1.0
        %v1006 = vlog2.pop %v1005
        %v1007 = vmul.f32 %v1006, 0.6931472
        %v1008 = vmul.f32 -0.5, %v998
        %v1009 = vadd.f32 %v1008, 1.0
        %v1010 = vmul.f32 %v1009, %v998
        %v1011 = vand.u32 2147483647, %v998
        %vm1012 = vcmp.lt.f32.partialorder %v1011, 0.0004427343
        %v1013 = vsel %vm1012, %v1010, %v1007
        %v1014 = vadd.f32 %v1000, 1.0
        %v1015 = vlog2.pop %v1014
        %v1016 = vmul.f32 %v1015, 0.6931472
        %v1017 = vmul.f32 -0.5, %v1000
        %v1018 = vadd.f32 %v1017, 1.0
        %v1019 = vmul.f32 %v1018, %v1000
        %v1020 = vand.u32 2147483647, %v1000
        %vm1021 = vcmp.lt.f32.partialorder %v1020, 0.0004427343
        %v1022 = vsel %vm1021, %v1019, %v1016
        %v1023 = vadd.f32 %v1002, 1.0
        %v1024 = vlog2.pop %v1023
        %v1025 = vmul.f32 %v1024, 0.6931472
        %v1026 = vmul.f32 -0.5, %v1002
        %v1027 = vadd.f32 %v1026, 1.0
        %v1028 = vmul.f32 %v1027, %v1002
        %v1029 = vand.u32 2147483647, %v1002
        %vm1030 = vcmp.lt.f32.partialorder %v1029, 0.0004427343
        %v1031 = vsel %vm1030, %v1028, %v1025
        %v1032 = vadd.f32 %v1004, 1.0
        %v1033 = vlog2.pop %v1032
        %v1034 = vmul.f32 %v1033, 0.6931472
        %v1035 = vmul.f32 -0.5, %v1004
        %v1036 = vadd.f32 %v1035, 1.0
        %v1037 = vmul.f32 %v1036, %v1004
        %v1038 = vand.u32 2147483647, %v1004
        %vm1039 = vcmp.lt.f32.partialorder %v1038, 0.0004427343
        %v1040 = vsel %vm1039, %v1037, %v1034
        %v1041 = vadd.f32 %v985, %v1013
        %v1042 = vadd.f32 %v986, %v1022
        %v1043 = vadd.f32 %v987, %v1031
        %v1044 = vadd.f32 %v988, %v1040
        %v1045 = vmul.f32 %v343, %v747
        %v1046 = vmul.f32 %v344, %v748
        %v1047 = vmul.f32 %v345, %v749
        %v1048 = vmul.f32 %v346, %v750
        %1050 = vset.pattern.permute.xlu0 0
        %1051 = vperm.xlu0 %1050, %v206
        %v1052 = vpop.permute.xlu0 %1051
        %1055 = vset.pattern.permute.xlu0 0
        %1056 = vperm.xlu0 %1055, %v207
        %v1057 = vpop.permute.xlu0 %1056
        %v1059 = vmul.f32 %v1052, %v1045
        %v1060 = vmul.f32 %v1052, %v1046
        %v1061 = vmul.f32 %v1057, %v1047
        %v1062 = vmul.f32 %v1057, %v1048
        %v1063 = vmul.f32 %v1041, %v807
        %v1064 = vmul.f32 %v1042, %v808
        %v1065 = vmul.f32 %v1043, %v809
        %v1066 = vmul.f32 %v1044, %v810
        %1068 = vset.pattern.permute.xlu0 0
        %1069 = vperm.xlu0 %1068, %v208
        %v1070 = vpop.permute.xlu0 %1069
        %1073 = vset.pattern.permute.xlu0 0
        %1074 = vperm.xlu0 %1073, %v209
        %v1075 = vpop.permute.xlu0 %1074
        %v1077 = vmul.f32 %v1070, %v1063
        %v1078 = vmul.f32 %v1070, %v1064
        %v1079 = vmul.f32 %v1075, %v1065
        %v1080 = vmul.f32 %v1075, %v1066
        %v1081 = vadd.f32 %v1059, %v1077
        %v1082 = vadd.f32 %v1060, %v1078
        %v1083 = vadd.f32 %v1061, %v1079
        %v1084 = vadd.f32 %v1062, %v1080
        %v1085 = vadd.f32 %v1081, %v1083
        %v1086 = vrot.slane %v1085, 4
        %v1087 = vadd.f32 %v1085, %v1086
        %v1088 = vrot.slane %v1087, 2
        %v1089 = vadd.f32 %v1087, %v1088
        %v1090 = vrot.slane %v1089, 1
        %v1091 = vadd.f32 %v1089, %v1090
        %v1092 = vadd.f32 %v1082, %v1084
        %v1093 = vrot.slane %v1092, 4
        %v1094 = vadd.f32 %v1092, %v1093
        %v1095 = vrot.slane %v1094, 2
        %v1096 = vadd.f32 %v1094, %v1095
        %v1097 = vrot.slane %v1096, 1
        %v1098 = vadd.f32 %v1096, %v1097
        %v1099 = vcombine.high %v914, %v914
        %v1101 = vmul.f32 %v172, %v1099
        %v1103 = vlaneseq
        %v1104 = vshrl.u32 %v1103, 7
        %v1105 = vsub.s32 0, %v1104
        %v1106 = vrot.slane %v1101, %v1105
        %v1107 = vlaneseq
        %v1108 = vshrl.u32 %v1107, 7
        %v1109 = vsub.s32 1, %v1108
        %v1110 = vrot.slane %v1101, %v1109
        %v1113 = vadd.f32 %v1091, %v1106
        %v1114 = vadd.f32 %v1098, %v1110
        %v1115 = vcombine.high %v953, %v953
        %v1117 = vmul.f32 %v174, %v1115
        %v1119 = vlaneseq
        %v1120 = vshrl.u32 %v1119, 7
        %v1121 = vsub.s32 0, %v1120
        %v1122 = vrot.slane %v1117, %v1121
        %v1123 = vlaneseq
        %v1124 = vshrl.u32 %v1123, 7
        %v1125 = vsub.s32 1, %v1124
        %v1126 = vrot.slane %v1117, %v1125
        %v1129 = vadd.f32 %v1113, %v1122
        %v1130 = vadd.f32 %v1114, %v1126
        %v1131 = vrot.slane %v627, 4
        %v1132 = vrot.slane %v629, 4
        %v1135 = vadd.f32 %v1129, %v1131
        %v1136 = vadd.f32 %v1130, %v1132
        %v1139 = vcombine.low %v1135, %v1136
        %v1141 = vunpack.c.l.s4 1966171168
        %v1142 = vunpack.c.0.s8 %v1141
        %v1143 = vlaneseq
        %v1144 = vshrl.u32 %v1143, 7
        %v1145 = vsub.s32 %v1142, %v1144
        %v1146 = vrot.slane %v1139, %v1145
        %v1148 = vunpack.c.l.s4 1966171168
        %v1149 = vunpack.c.0.s8 %v1148
        %v1150 = vlaneseq
        %v1151 = vshrl.u32 %v1150, 7
        %v1152 = vsub.s32 %v1149, %v1151
        %v1153 = vrot.slane %v1146, %v1152
        %v1155 = vlaneseq
        %vm1156 = vcmp.ge.s32.totalorder %v1155, 0
        %vm1157 = vcmp.lt.s32.totalorder %v1155, 256
        %vm1158 = vmand %vm1156, %vm1157
        %1159 = vst.msk [vmem:[%s164] sm:$0x3] %vm1158, %v1153
        %s1160 = sand.u32 %s93, 1
        %s1161 = scalar_lea.sflag [#allocation3], %s1160
        %s1162 = sand.u32 %s93, 1
        %s1163 = smul.addr %s1162, 2
        %s1164 = scalar_lea.vmem [#allocation2], %s1163
        // Predicated region
        $region33: #{tpu_custom_call.1} parent=31 // pred_check
          %p1165 = pneg %p103
        $region34: #{tpu_custom_call.1} parent=31 // pred_check_branch
          %1167 = sbr.rel (%p1165) target = $region36
        $region35: #{tpu_custom_call.1} parent=31 // pred_region
          %s1168 = smul.u32 2, %s17
          %s1170 = ssub.s32 32, 32
          %1171 = vsyncadd %s1161, %s1170
          %s1172 = smul.addr %s1168, 16
          %s1173 = scalar_lea.hbm %s3, %s1172
          %s1175 = sshll.u32 %s1164, 4
          %s1176 = int_to_ptr.vmem [resolvable:$true] %s1175
          %1178 = dma.vmem_to_hbm [thread:$0]  %s1176, 32, %s1173, %s1161
        $region36: #{tpu_custom_call.1} parent=31 // pred_fallthru
          _
      $region32: #{tpu_custom_call.1} parent=5 // pred_fallthru
        _
      %p1179 = scmp.le.s32.totalorder 2, %s12
      // Predicated region
      $region37: #{tpu_custom_call.1} parent=5 // pred_check
        %p1180 = pneg %p1179
      $region38: #{tpu_custom_call.1} parent=5 // pred_check_branch
        %1182 = sbr.rel (%p1180) target = $region40
      $region39: #{tpu_custom_call.1} parent=5 // pred_region
        %s1183 = ssub.s32 %s12, 2
        // Predicated region
        $region41: #{tpu_custom_call.1} parent=39 // pred_check
          %p1184 = pneg %p109
        $region42: #{tpu_custom_call.1} parent=39 // pred_check_branch
          %1186 = sbr.rel (%p1184) target = $region44
        $region43: #{tpu_custom_call.1} parent=39 // pred_region
          %s1187 = sand.u32 %s94, 1
          %s1188 = scalar_lea.sflag [#allocation3], %s1187
          %s1189 = sand.u32 %s94, 1
          %s1190 = smul.addr %s1189, 2
          %s1191 = scalar_lea.vmem [#allocation2], %s1190
          %1192 = dma.done %s1188, 32
        $region44: #{tpu_custom_call.1} parent=39 // pred_fallthru
          _
      $region40: #{tpu_custom_call.1} parent=5 // pred_fallthru
        _
    $region6: #{tpu_custom_call.1} parent=1 // loop_footer
      %s16 = sadd.s32 1, %s12
    $region7: #{tpu_custom_call.1} parent=1 // loop_footer_branch
      %11 = sbr.rel target = $region3
    $region8: #{tpu_custom_call.1} parent=1 // loop_exit
      _
    %1193 = vsyncpa [#allocation3], 1
    %s1194 = scalar_lea.sflag [#allocation3], 1
    %1195 = vsyncpa %s1194, 1

</llo_original>
